<compile_context>
chip_gen: v7x
topology: tpu7x:2x2x1
jax: 0.10.0
libtpu: 0.0.40
codegen_flags: <defaults>
</compile_context>

<pallas_src>
import functools

import jax
import jax.numpy as jnp
from jax import lax
from jax.experimental import pallas as pl
from jax.experimental.pallas import tpu as pltpu

_LANES = 128
_SUBLANES = 8


def _round_up(x, m):
    return ((x + m - 1) // m) * m


def _default_num_splits():
    """2-way 'parallel' split only where a second TensorCore can use it."""
    try:
        kind = jax.devices()[0].device_kind.lower()
    except Exception:
        return 1
    # v5e / v6e ("lite") have a single TensorCore: a 2nd split is just a serial
    # outer loop + an extra resident accumulator, so keep 1. Megacore (v4/v5p)
    # and v7x (2 TCs) get 2.
    if "lite" in kind or "v5e" in kind or "v6e" in kind:
        return 1
    return 2


def _qfocal_kernel(pred_ref, true_ref, out_ref, *, gamma, alpha, total_n,
                   tile_rows, tiles_per_split, approx_sigmoid, may_edge):
    p = pl.program_id(0)   # "parallel" split axis (both TCs on v7x / megacore)
    j = pl.program_id(1)   # "arbitrary" reduction axis over row tiles

    # out_ref is an (8, 128) f32 block resident across the inner axis: it acts
    # as the per-split vector accumulator (no per-step cross-lane reduce).
    @pl.when(j == 0)
    def _():
        out_ref[...] = jnp.zeros_like(out_ref)

    x = pred_ref[...].astype(jnp.float32)   # logits
    z = true_ref[...].astype(jnp.float32)   # quality targets in [0, 1]

    # Numerically stable BCE-with-logits (matches torch.nn.BCEWithLogitsLoss):
    #   max(x, 0) - x*z + log1p(exp(-|x|))
    # t = exp(-|x|) is shared with the sigmoid below -> one exp per element.
    t = jnp.exp(-jnp.abs(x))
    bce = jnp.maximum(x, 0.0) - x * z + jnp.log1p(t)

    # sigmoid(x) = 1/(1+t) for x>=0, t/(1+t) for x<0 (reuses t, no extra exp).
    # approx=True -> EUP vrcp (free slot); exact VALU divide if approx_sigmoid
    # is False.
    r = pl.reciprocal(1.0 + t, approx=approx_sigmoid)
    pred_prob = jnp.where(x >= 0.0, r, t * r)

    # alpha_factor = z*alpha + (1-z)*(1-alpha) == (1-alpha) + z*(2*alpha - 1)
    alpha_factor = (1.0 - alpha) + z * (2.0 * alpha - 1.0)
    m = jnp.abs(z - pred_prob)
    if gamma == 1.5:
        modulating = m * jnp.sqrt(m)          # avoids exp(g*log m); no log(0)
    elif float(gamma).is_integer() and gamma >= 0:
        modulating = jnp.ones_like(m)
        for _ in range(int(gamma)):
            modulating = modulating * m
    else:
        # Fallback: exp(gamma*log(m)); guard m==0 against -inf*0.
        modulating = jnp.maximum(m, jnp.finfo(jnp.float32).tiny) ** gamma

    loss = bce * alpha_factor * modulating

    def fold(v):
        # (tile_rows, 128) -> (8, 128) via pure VPU adds (no XLU traffic).
        return v.reshape(tile_rows // _SUBLANES, _SUBLANES, _LANES).sum(axis=0)

    if not may_edge:
        # Static fast path: grid exactly covers the valid rows, no partial row.
        out_ref[...] += fold(loss)
    else:
        full_rows = total_n // _LANES          # fully-valid rows (python int)
        rem = total_n % _LANES                 # valid lanes in the partial row
        row_off = (p * tiles_per_split + j) * tile_rows
        is_edge = row_off + tile_rows > full_rows

        @pl.when(jnp.logical_not(is_edge))
        def _():
            out_ref[...] += fold(loss)

        # Only the edge tile(s) pay for the mask (row/lane indices only; no
        # flat index, so no int32 overflow for huge inputs).
        @pl.when(is_edge)
        def _():
            ridx = lax.broadcasted_iota(jnp.int32, loss.shape, 0) + row_off
            lidx = lax.broadcasted_iota(jnp.int32, loss.shape, 1)
            mask = (ridx < full_rows) | ((ridx == full_rows) & (lidx < rem))
            out_ref[...] += fold(jnp.where(mask, loss, 0.0))


def qfocal_loss(pred, true, *, gamma=1.5, alpha=0.25, reduction="mean",
                tile_rows=8192, num_splits=None, approx_sigmoid=True):
    """Quality focal loss (BCE-with-logits base) as a Pallas TPU kernel.

    Inputs may be any shape and f32 or bf16 (bf16 halves HBM traffic; the cast
    to f32 happens in-kernel). Sizes that are a multiple of 128 are streamed
    with zero padding/copies; other sizes pad only to the next 128 multiple.
    """
    assert pred.shape == true.shape
    total_n = int(pred.size)
    flat_pred = pred.reshape(-1)
    flat_true = true.reshape(-1)

    rows = pl.cdiv(total_n, _LANES)

    # Pad only when numel is not a multiple of 128 (needed for the free 2-D
    # view). The padded tail is masked in-kernel on the edge tile.
    # TODO(synk): a 1-D BlockSpec path would drop this copy for ragged sizes.
    pad_n = rows * _LANES - total_n
    if pad_n:
        flat_pred = jnp.pad(flat_pred, (0, pad_n))
        flat_true = jnp.pad(flat_true, (0, pad_n))

    pred2 = flat_pred.reshape(rows, _LANES)
    true2 = flat_true.reshape(rows, _LANES)

    ns = _default_num_splits() if num_splits is None else int(num_splits)
    ns = max(1, min(ns, pl.cdiv(rows, _SUBLANES)))

    rows_per_split = pl.cdiv(rows, ns)
    tr = min(int(tile_rows), _round_up(rows_per_split, _SUBLANES))
    tr = max(_SUBLANES, _round_up(tr, _SUBLANES))
    tiles_per_split = pl.cdiv(rows_per_split, tr)

    # The grid may logically overhang the array. Clamp block indices so every
    # DMA starts inside the array; fully out-of-range steps simply re-read the
    # last block and their contribution is masked to zero in-kernel.
    last_block = pl.cdiv(rows, tr) - 1

    def in_index_map(p, j):
        return (jnp.minimum(p * tiles_per_split + j, last_block), 0)

    # Does any tile touch rows/lanes beyond the valid data? (static)
    may_edge = (ns * tiles_per_split * tr) > (total_n // _LANES)

    kernel = functools.partial(
        _qfocal_kernel, gamma=gamma, alpha=alpha, total_n=total_n,
        tile_rows=tr, tiles_per_split=tiles_per_split,
        approx_sigmoid=approx_sigmoid, may_edge=may_edge)

    # 2 inputs x 2 pipeline buffers per block; keep headroom but never exceed
    # ~48 MiB (v7x has 64 MiB physical VMEM per TensorCore).
    block_bytes = tr * _LANES * (pred2.dtype.itemsize + true2.dtype.itemsize)
    vmem_bytes = int(min(48 << 20, max(32 << 20, 2 * block_bytes + (4 << 20))))

    partials = pl.pallas_call(
        kernel,
        out_shape=jax.ShapeDtypeStruct((ns * _SUBLANES, _LANES), jnp.float32),
        grid_spec=pltpu.PrefetchScalarGridSpec(
            num_scalar_prefetch=0,
            grid=(ns, tiles_per_split),
            in_specs=[
                pl.BlockSpec((tr, _LANES), in_index_map),
                pl.BlockSpec((tr, _LANES), in_index_map),
            ],
            out_specs=pl.BlockSpec((_SUBLANES, _LANES), lambda p, j: (p, 0)),
        ),
        compiler_params=pltpu.CompilerParams(
            dimension_semantics=("parallel", "arbitrary"),
            vmem_limit_bytes=vmem_bytes,
        ),
    )(pred2, true2)

    total = jnp.sum(partials, dtype=jnp.float32)
    if reduction == "mean":
        return total / jnp.float32(total_n)
    elif reduction == "sum":
        return total
    else:
        # TODO(synk): reduction='none' needs an elementwise no-reduce kernel
        # variant returning the full loss map; not implemented here.
        raise NotImplementedError("reduction must be 'mean' or 'sum'")


def _qfocal_ref(pred, true, gamma=1.5, alpha=0.25):
    x = pred.astype(jnp.float32)
    z = true.astype(jnp.float32)
    bce = jnp.maximum(x, 0.0) - x * z + jnp.log1p(jnp.exp(-jnp.abs(x)))
    p = jax.nn.sigmoid(x)
    af = z * alpha + (1.0 - z) * (1.0 - alpha)
    mf = jnp.abs(z - p) ** gamma
    return jnp.mean(bce * af * mf)


if __name__ == "__main__":
    key = jax.random.PRNGKey(0)
    k1, k2, k3, k4 = jax.random.split(key, 4)

    # NCHW logits / quality targets (B=2, C=4, H=W=16), as in a YOLO obj head.
    pred = jax.random.normal(k1, (2, 4, 16, 16), dtype=jnp.float32)
    true = jax.random.uniform(k2, (2, 4, 16, 16), dtype=jnp.float32)
    ref = _qfocal_ref(pred, true)

    # Default (approx EUP reciprocal for sigmoid): ~1e-4-level sigmoid error.
    out = jax.block_until_ready(qfocal_loss(pred, true))
    assert jnp.allclose(out, ref, rtol=5e-3, atol=1e-6), (out, ref)

    # Exact-sigmoid path for a tight check of everything else.
    out_exact = jax.block_until_ready(
        qfocal_loss(pred, true, approx_sigmoid=False))
    assert jnp.allclose(out_exact, ref, rtol=1e-5, atol=1e-7), (out_exact, ref)

    # Ragged size (not a multiple of 128) exercises the edge-tile mask path.
    pred2 = jax.random.normal(k3, (2, 3, 7, 9), dtype=jnp.float32)
    true2 = (jax.random.uniform(k4, (2, 3, 7, 9)) > 0.5).astype(jnp.float32)
    out2 = jax.block_until_ready(qfocal_loss(pred2, true2))
    ref2 = _qfocal_ref(pred2, true2)
    assert jnp.allclose(out2, ref2, rtol=5e-3, atol=1e-6), (out2, ref2)

    # bf16 inputs (halved HBM traffic); in-kernel cast keeps math in f32.
    out3 = jax.block_until_ready(
        qfocal_loss(pred.astype(jnp.bfloat16), true.astype(jnp.bfloat16)))
    assert jnp.allclose(out3, ref, rtol=3e-2, atol=1e-4), (out3, ref)

    # 'sum' reduction.
    out4 = jax.block_until_ready(qfocal_loss(pred, true, reduction="sum"))
    assert jnp.allclose(out4, ref * pred.size, rtol=5e-3, atol=1e-5), (out4,)

    print("KERNEL_OK")
</pallas_src>

<mosaic_0001>
module attributes {stable_mosaic.version = 11 : i64} {
  func.func @_qfocal_kernel(%arg0: i32, %arg1: i32, %arg2: memref<8x128xf32, #tpu.memory_space<vmem>>, %arg3: memref<8x128xf32, #tpu.memory_space<vmem>>, %arg4: memref<8x128xf32, #tpu.memory_space<vmem>>) attributes {dimension_semantics = [#tpu.dimension_semantics<parallel>, #tpu.dimension_semantics<arbitrary>], iteration_bounds = array<i64: 2, 1>, scalar_prefetch = 0 : i64, scratch_operands = 0 : i64, tpu.core_type = #tpu.core_type<tc>, window_params = [{transform_indices = @transform_0, window_bounds = array<i64: 8, 128>}, {transform_indices = @transform_1, window_bounds = array<i64: 8, 128>}, {transform_indices = @transform_2, window_bounds = array<i64: 8, 128>}]} {
    %c0_i32 = arith.constant 0 : i32
    %0 = arith.cmpi eq, %arg1, %c0_i32 : i32
    %1 = arith.extui %0 : i1 to i32
    %c0_i32_0 = arith.constant 0 : i32
    %2 = arith.cmpi ne, %1, %c0_i32_0 : i32
    scf.if %2 {
      %cst_14 = arith.constant 0.000000e+00 : f32
      %37 = vector.broadcast %cst_14 : f32 to vector<8x128xf32>
      %c0_15 = arith.constant 0 : index
      %c0_16 = arith.constant 0 : index
      %38 = vector.load %arg4[%c0_15, %c0_16] : memref<8x128xf32, #tpu.memory_space<vmem>>, vector<8x128xf32>
      tpu.vector_store %arg4[%c0_15, %c0_16], %37 {strides = array<i32>} : memref<8x128xf32, #tpu.memory_space<vmem>>, vector<8x128xf32>,
    } else {
    }
    %c0 = arith.constant 0 : index
    %c0_1 = arith.constant 0 : index
    %3 = vector.load %arg2[%c0, %c0_1] : memref<8x128xf32, #tpu.memory_space<vmem>>, vector<8x128xf32>
    %c0_2 = arith.constant 0 : index
    %c0_3 = arith.constant 0 : index
    %4 = vector.load %arg3[%c0_2, %c0_3] : memref<8x128xf32, #tpu.memory_space<vmem>>, vector<8x128xf32>
    %5 = math.absf %3 : vector<8x128xf32>
    %cst = arith.constant 0.000000e+00 : f32
    %6 = vector.broadcast %cst : f32 to vector<8x128xf32>
    %7 = arith.subf %6, %5 : vector<8x128xf32>
    %8 = math.exp %7 : vector<8x128xf32>
    %cst_4 = arith.constant 0.000000e+00 : f32
    %9 = vector.broadcast %cst_4 : f32 to vector<8x128xf32>
    %10 = arith.maximumf %3, %9 : vector<8x128xf32>
    %11 = arith.mulf %3, %4 : vector<8x128xf32>
    %12 = arith.subf %10, %11 : vector<8x128xf32>
    %13 = math.log1p %8 : vector<8x128xf32>
    %14 = arith.addf %12, %13 : vector<8x128xf32>
    %cst_5 = arith.constant 1.000000e+00 : f32
    %15 = vector.broadcast %cst_5 : f32 to vector<8x128xf32>
    %16 = arith.addf %15, %8 : vector<8x128xf32>
    %17 = tpu.reciprocal %16 {approx = true} : vector<8x128xf32> -> vector<8x128xf32>
    %cst_6 = arith.constant 0.000000e+00 : f32
    %18 = vector.broadcast %cst_6 : f32 to vector<8x128xf32>
    %19 = arith.cmpf oge, %3, %18 : vector<8x128xf32>
    %20 = arith.mulf %8, %17 : vector<8x128xf32>
    %21 = arith.select %19, %17, %20 : vector<8x128xi1>, vector<8x128xf32>
    %cst_7 = arith.constant -5.000000e-01 : f32
    %22 = vector.broadcast %cst_7 : f32 to vector<8x128xf32>
    %23 = arith.mulf %4, %22 : vector<8x128xf32>
    %cst_8 = arith.constant 7.500000e-01 : f32
    %24 = vector.broadcast %cst_8 : f32 to vector<8x128xf32>
    %25 = arith.addf %24, %23 : vector<8x128xf32>
    %26 = arith.subf %4, %21 : vector<8x128xf32>
    %27 = math.absf %26 : vector<8x128xf32>
    %28 = math.sqrt %27 : vector<8x128xf32>
    %29 = arith.mulf %27, %28 : vector<8x128xf32>
    %30 = arith.mulf %14, %25 : vector<8x128xf32>
    %31 = arith.mulf %30, %29 : vector<8x128xf32>
    %c0_9 = arith.constant 0 : index
    %c0_10 = arith.constant 0 : index
    %32 = vector.load %arg4[%c0_9, %c0_10] : memref<8x128xf32, #tpu.memory_space<vmem>>, vector<8x128xf32>
    %33 = vector.shape_cast %31 : vector<8x128xf32> to vector<1x8x128xf32>
    %cst_11 = arith.constant dense<0.000000e+00> : vector<8x128xf32>
    %34 = vector.multi_reduction <add>, %33, %cst_11 [0] : vector<1x8x128xf32> to vector<8x128xf32>
    %35 = arith.addf %32, %34 : vector<8x128xf32>
    %c0_12 = arith.constant 0 : index
    %c0_13 = arith.constant 0 : index
    %36 = vector.load %arg4[%c0_12, %c0_13] : memref<8x128xf32, #tpu.memory_space<vmem>>, vector<8x128xf32>
    tpu.vector_store %arg4[%c0_12, %c0_13], %35 {strides = array<i32>} : memref<8x128xf32, #tpu.memory_space<vmem>>, vector<8x128xf32>,
    return
  }
  func.func @transform_0(%arg0: i32, %arg1: i32) -> (i32, i32) {
    %c1_i32 = arith.constant 1 : i32
    %0 = arith.muli %arg0, %c1_i32 : i32
    %1 = arith.addi %0, %arg1 : i32
    %c1_i32_0 = arith.constant 1 : i32
    %2 = arith.minsi %1, %c1_i32_0 : i32
    %c0_i32 = arith.constant 0 : i32
    %c0_i32_1 = arith.constant 0 : i32
    return %2, %c0_i32 : i32, i32
  }
  func.func @transform_1(%arg0: i32, %arg1: i32) -> (i32, i32) {
    %c1_i32 = arith.constant 1 : i32
    %0 = arith.muli %arg0, %c1_i32 : i32
    %1 = arith.addi %0, %arg1 : i32
    %c1_i32_0 = arith.constant 1 : i32
    %2 = arith.minsi %1, %c1_i32_0 : i32
    %c0_i32 = arith.constant 0 : i32
    %c0_i32_1 = arith.constant 0 : i32
    return %2, %c0_i32 : i32, i32
  }
  func.func @transform_2(%arg0: i32, %arg1: i32) -> (i32, i32) {
    %c0_i32 = arith.constant 0 : i32
    %c0_i32_0 = arith.constant 0 : i32
    return %arg0, %c0_i32 : i32, i32
  }
}

</mosaic_0001>

<llo_original>
// kernel: tpu_custom_call.1
$region0: #{tpu_custom_call.1}
  #allocation0 [shape = 'u32[]', space=smem, size = 0x4, offset = 0x4, fixed_abs, tag = 'smem constant byte address 0x4 - core index']
  #allocation1 [shape = 'u32[144,128]{1,0:T(1,128)}', space=vmem, size = 0x12000, scoped, tag = 'internal scratch']
  %s0 = inlined_call_operand.hbm [shape: f32[16,128], index: 0, kind: input, shape index: {}]
  %s1 = inlined_call_operand.hbm [shape: f32[16,128], index: 1, kind: input, shape index: {}]
  %s2 = inlined_call_operand.hbm [shape: f32[16,128], index: 2, kind: output, shape index: {}]
  %s3 = sld [smem:[#allocation0]]
  $region53: #{tpu_custom_call.1} parent=0
    _
  %s5 = ssub.s32 1, %s3
  %s6 = scalar_select 0, %s5, %s3
  $region1: #{tpu_custom_call.1} parent=0
    #allocation2 [shape = 'u8[8192]{0}', space=vmem, size = 0x2000, scoped, tag = 'input window, operand 0']
    #allocation3 [shape = 's32[2]{0}', space=sflag, size = 0x8, scoped, tag = 'scoped memory for tpu_custom_call.1']
    #allocation4 [shape = 's32[2]{0}', space=sflag, size = 0x8, scoped, tag = 'scoped memory for tpu_custom_call.1']
    #allocation5 [shape = 'u8[8192]{0}', space=vmem, size = 0x2000, scoped, tag = 'input window, operand 1']
    #allocation6 [shape = 's32[2]{0}', space=sflag, size = 0x8, scoped, tag = 'scoped memory for tpu_custom_call.1']
    #allocation7 [shape = 'u8[8192]{0}', space=vmem, size = 0x2000, scoped, tag = 'output window, operand 0']
    %7 = vsyncpa [#allocation3], 0
    %s8 = scalar_lea.sflag [#allocation3], 1
    %9 = vsyncpa %s8, 0
    %10 = vsyncpa [#allocation6], 0
    %s11 = scalar_lea.sflag [#allocation6], 1
    %12 = vsyncpa %s11, 0
    %13 = vsyncpa [#allocation4], 0
    %s14 = scalar_lea.sflag [#allocation4], 1
    %15 = vsyncpa %s14, 0
    loop: start=0, step=1, limit=4
    $region2: #{tpu_custom_call.1} parent=1 // loop_pre_header
      _
    $region3: #{tpu_custom_call.1} parent=1 // loop_header
      %s17 = sphi 0, %s21
      %p18 = scmp.ge.s32.totalorder %s17, 4
      %s24 = sphi 0, %s36
      %s25 = sphi 0, %s32
      %s26 = sphi 0, %s24
      %s27 = sphi 0, %s25
      %s28 = sphi 0, %s26
      %s29 = sphi 0, %s27
      %s45 = sphi 0, %s47
      %s48 = sphi 0, %s45
      %s49 = sphi 0, %s48
      %s65 = sphi 0, %s49
      %s77 = sphi 0, %s79
      %s80 = sphi 0, %s77
      %s81 = sphi 0, %s80
      %s97 = sphi 0, %s81
      %s103 = sphi 0, %s105
      %s106 = sphi 0, %s103
      %s107 = sphi 0, %s106
      %s123 = sphi 0, %s107
    $region4: #{tpu_custom_call.1} parent=1 // loop_header_branch
      %20 = sbr.rel (%p18) target = $region8
    $region5: #{tpu_custom_call.1} parent=1 // loop_body
      %s22 = ssub.s32 %s17, 1
      %s23 = ssub.s32 %s17, 2
      %s30 = sadd.s32 1, %s25
      %p31 = scmp.ge.s32.totalorder %s30, 1
      %s32 = scalar_select %p31, 0, %s30
      %s33 = sadd.s32 1, %s24
      %s34 = scalar_select %p31, %s33, %s24
      %p35 = scmp.ge.s32.totalorder %s34, 2
      %s36 = scalar_select %p35, 0, %s34
      %s37 = sadd.s32 %s24, %s25
      %p38 = scmp.lt.s32.totalorder %s37, 1
      %s39 = scalar_select %p38, %s37, 1
      %s40 = sadd.s32 %s36, %s32
      %p41 = scmp.lt.s32.totalorder %s40, 1
      %s42 = scalar_select %p41, %s40, 1
      %s43 = ssub.s32 %s39, %s42
      %p44 = scmp.eq.s32.totalorder %s43, 0
      %s46 = sadd.s32 %s45, 1
      %s47 = scalar_select %p44, %s45, %s46
      %p50 = pneg %p44
      %p51 = scmp.eq.s32.totalorder %s17, 1
      %p52 = por %p50, %p51
      %p53 = scmp.ne.s32.totalorder %s45, %s48
      %p54 = scmp.eq.s32.totalorder %s17, 0
      %p55 = por %p53, %p54
      %p56 = scmp.ne.s32.totalorder %s45, %s48
      %p57 = scmp.eq.s32.totalorder %s22, 1
      %p58 = por %p56, %p57
      %p59 = scmp.ne.s32.totalorder %s48, %s49
      %p60 = scmp.eq.s32.totalorder %s22, 0
      %p61 = por %p59, %p60
      %p62 = scmp.ne.s32.totalorder %s48, %s49
      %p63 = scmp.eq.s32.totalorder %s23, 1
      %p64 = por %p62, %p63
      %p66 = scmp.ne.s32.totalorder %s49, %s65
      %p67 = scmp.eq.s32.totalorder %s23, 0
      %p68 = por %p66, %p67
      %s69 = sadd.s32 %s24, %s25
      %p70 = scmp.lt.s32.totalorder %s69, 1
      %s71 = scalar_select %p70, %s69, 1
      %s72 = sadd.s32 %s36, %s32
      %p73 = scmp.lt.s32.totalorder %s72, 1
      %s74 = scalar_select %p73, %s72, 1
      %s75 = ssub.s32 %s71, %s74
      %p76 = scmp.eq.s32.totalorder %s75, 0
      %s78 = sadd.s32 %s77, 1
      %s79 = scalar_select %p76, %s77, %s78
      %p82 = pneg %p76
      %p83 = scmp.eq.s32.totalorder %s17, 1
      %p84 = por %p82, %p83
      %p85 = scmp.ne.s32.totalorder %s77, %s80
      %p86 = scmp.eq.s32.totalorder %s17, 0
      %p87 = por %p85, %p86
      %p88 = scmp.ne.s32.totalorder %s77, %s80
      %p89 = scmp.eq.s32.totalorder %s22, 1
      %p90 = por %p88, %p89
      %p91 = scmp.ne.s32.totalorder %s80, %s81
      %p92 = scmp.eq.s32.totalorder %s22, 0
      %p93 = por %p91, %p92
      %p94 = scmp.ne.s32.totalorder %s80, %s81
      %p95 = scmp.eq.s32.totalorder %s23, 1
      %p96 = por %p94, %p95
      %p98 = scmp.ne.s32.totalorder %s81, %s97
      %p99 = scmp.eq.s32.totalorder %s23, 0
      %p100 = por %p98, %p99
      %s101 = ssub.s32 %s24, %s36
      %p102 = scmp.eq.s32.totalorder %s101, 0
      %s104 = sadd.s32 %s103, 1
      %s105 = scalar_select %p102, %s103, %s104
      %p108 = pneg %p102
      %p109 = scmp.eq.s32.totalorder %s17, 1
      %p110 = por %p108, %p109
      %p111 = scmp.ne.s32.totalorder %s103, %s106
      %p112 = scmp.eq.s32.totalorder %s17, 0
      %p113 = por %p111, %p112
      %p114 = scmp.ne.s32.totalorder %s103, %s106
      %p115 = scmp.eq.s32.totalorder %s22, 1
      %p116 = por %p114, %p115
      %p117 = scmp.ne.s32.totalorder %s106, %s107
      %p118 = scmp.eq.s32.totalorder %s22, 0
      %p119 = por %p117, %p118
      %p120 = scmp.ne.s32.totalorder %s106, %s107
      %p121 = scmp.eq.s32.totalorder %s23, 1
      %p122 = por %p120, %p121
      %p124 = scmp.ne.s32.totalorder %s107, %s123
      %p125 = scmp.eq.s32.totalorder %s23, 0
      %p126 = por %p124, %p125
      %p127 = scmp.le.s32.totalorder 1, %s17
      %p128 = scmp.lt.s32.totalorder %s17, 3
      %p129 = pnand %p127, %p128
      %p130 = pneg %p129
      // Predicated region
      $region9: #{tpu_custom_call.1} parent=5 // pred_check
        _
      $region10: #{tpu_custom_call.1} parent=5 // pred_check_branch
        %132 = sbr.rel (%p129) target = $region12
      $region11: #{tpu_custom_call.1} parent=5 // pred_region
        %s133 = ssub.s32 %s17, 1
      $region12: #{tpu_custom_call.1} parent=5 // pred_fallthru
        _
      %p134 = scmp.lt.s32.totalorder %s17, 2
      // Predicated region
      $region13: #{tpu_custom_call.1} parent=5 // pred_check
        %p135 = pneg %p134
      $region14: #{tpu_custom_call.1} parent=5 // pred_check_branch
        %137 = sbr.rel (%p135) target = $region16
      $region15: #{tpu_custom_call.1} parent=5 // pred_region
        // Predicated region
        $region17: #{tpu_custom_call.1} parent=15 // pred_check
          %p138 = pneg %p55
        $region18: #{tpu_custom_call.1} parent=15 // pred_check_branch
          %140 = sbr.rel (%p138) target = $region20
        $region19: #{tpu_custom_call.1} parent=15 // pred_region
          %s141 = sand.u32 %s45, 1
          %s142 = scalar_lea.sflag [#allocation3], %s141
          %s143 = sand.u32 %s45, 1
          %s144 = smul.addr %s143, 8
          %s145 = scalar_lea.vmem [#allocation2], %s144
          %s146 = sadd.s32 %s24, %s25
          %p147 = scmp.lt.s32.totalorder %s146, 1
          %s148 = scalar_select %p147, %s146, 1
          %s150 = ssub.s32 128, 128
          %151 = vsyncadd %s142, %s150
          %s152 = smul.addr %s148, 128
          %s153 = scalar_lea.hbm %s0, %s152
          %s155 = sshll.u32 %s145, 4
          %s156 = int_to_ptr.vmem [resolvable:$true] %s155
          %158 = dma.hbm_to_vmem [thread:$0]  %s153, 128, %s156, %s142
        $region20: #{tpu_custom_call.1} parent=15 // pred_fallthru
          _
        // Predicated region
        $region21: #{tpu_custom_call.1} parent=15 // pred_check
          %p159 = pneg %p87
        $region22: #{tpu_custom_call.1} parent=15 // pred_check_branch
          %161 = sbr.rel (%p159) target = $region24
        $region23: #{tpu_custom_call.1} parent=15 // pred_region
          %s162 = sand.u32 %s77, 1
          %s163 = scalar_lea.sflag [#allocation6], %s162
          %s164 = sand.u32 %s77, 1
          %s165 = smul.addr %s164, 8
          %s166 = scalar_lea.vmem [#allocation5], %s165
          %s167 = sadd.s32 %s24, %s25
          %p168 = scmp.lt.s32.totalorder %s167, 1
          %s169 = scalar_select %p168, %s167, 1
          %s171 = ssub.s32 128, 128
          %172 = vsyncadd %s163, %s171
          %s173 = smul.addr %s169, 128
          %s174 = scalar_lea.hbm %s1, %s173
          %s176 = sshll.u32 %s166, 4
          %s177 = int_to_ptr.vmem [resolvable:$true] %s176
          %179 = dma.hbm_to_vmem [thread:$0]  %s174, 128, %s177, %s163
        $region24: #{tpu_custom_call.1} parent=15 // pred_fallthru
          _
      $region16: #{tpu_custom_call.1} parent=5 // pred_fallthru
        _
      %p180 = scmp.le.s32.totalorder 1, %s17
      %p181 = scmp.lt.s32.totalorder %s17, 3
      %p182 = pnand %p180, %p181
      %p183 = pneg %p182
      // Predicated region
      $region25: #{tpu_custom_call.1} parent=5 // pred_check
        _
      $region26: #{tpu_custom_call.1} parent=5 // pred_check_branch
        %185 = sbr.rel (%p182) target = $region28
      $region27: #{tpu_custom_call.1} parent=5 // pred_region
        %s186 = ssub.s32 %s17, 1
        %s187 = sand.u32 %s48, 1
        %s188 = scalar_lea.sflag [#allocation3], %s187
        %s189 = sand.u32 %s48, 1
        %s190 = smul.addr %s189, 8
        %s191 = scalar_lea.vmem [#allocation2], %s190
        // Predicated region
        $region29: #{tpu_custom_call.1} parent=27 // pred_check
          %p192 = pneg %p61
        $region30: #{tpu_custom_call.1} parent=27 // pred_check_branch
          %194 = sbr.rel (%p192) target = $region32
        $region31: #{tpu_custom_call.1} parent=27 // pred_region
          %195 = dma.done %s188, 128
        $region32: #{tpu_custom_call.1} parent=27 // pred_fallthru
          _
        %s196 = sand.u32 %s80, 1
        %s197 = scalar_lea.sflag [#allocation6], %s196
        %s198 = sand.u32 %s80, 1
        %s199 = smul.addr %s198, 8
        %s200 = scalar_lea.vmem [#allocation5], %s199
        // Predicated region
        $region33: #{tpu_custom_call.1} parent=27 // pred_check
          %p201 = pneg %p93
        $region34: #{tpu_custom_call.1} parent=27 // pred_check_branch
          %203 = sbr.rel (%p201) target = $region36
        $region35: #{tpu_custom_call.1} parent=27 // pred_region
          %204 = dma.done %s197, 128
        $region36: #{tpu_custom_call.1} parent=27 // pred_fallthru
          _
        %s205 = sand.u32 %s48, 1
        %s206 = scalar_lea.sflag [#allocation3], %s205
        %s207 = sand.u32 %s48, 1
        %s208 = smul.addr %s207, 8
        %s209 = scalar_lea.vmem [#allocation2], %s208
        %p210 = pneg %p61
        %p211 = pneg %p58
        %s212 = sand.u32 %s80, 1
        %s213 = scalar_lea.sflag [#allocation6], %s212
        %s214 = sand.u32 %s80, 1
        %s215 = smul.addr %s214, 8
        %s216 = scalar_lea.vmem [#allocation5], %s215
        %p217 = pneg %p93
        %p218 = pneg %p90
        %p219 = pneg %p119
        %p220 = pneg %p116
        %s221 = sand.u32 %s106, 1
        %s222 = scalar_lea.sflag [#allocation4], %s221
        %s223 = sand.u32 %s106, 1
        %s224 = smul.addr %s223, 8
        %s225 = scalar_lea.vmem [#allocation7], %s224
        %s226 = sadd.s32 %s26, %s27
        %p227 = scmp.lt.s32.totalorder %s226, 1
        %s228 = scalar_select %p227, %s226, 1
        %s229 = sadd.s32 %s26, %s27
        %p230 = scmp.lt.s32.totalorder %s229, 1
        %s231 = scalar_select %p230, %s229, 1
        %p232 = scmp.eq.s32.totalorder %s27, 0
        // Predicated region
        $region37: #{tpu_custom_call.1} parent=27 // pred_check
          %p233 = pneg %p232
        $region38: #{tpu_custom_call.1} parent=27 // pred_check_branch
          %235 = sbr.rel (%p233) target = $region40
        $region39: #{tpu_custom_call.1} parent=27 // pred_region
          %236 = vst [vmem:[%s225] sm:$0xff] 0.0
        $region40: #{tpu_custom_call.1} parent=27 // pred_fallthru
          _
        %v237 = vld [vmem:[%s191] sm:$0xff]
        %v238 = vld [vmem:[%s200] sm:$0xff]
        %v239 = vand.u32 2147483647, %v237
        %v240 = vsub.f32 0.0, %v239
        %v241 = vmul.f32 %v240, 1.442695
        %v242 = vpow.pop %v241
        %v243 = vmax.f32 %v237, 0.0
        %v244 = vmul.f32 %v237, %v238
        %v245 = vsub.f32 %v243, %v244
        %v246 = vadd.f32 %v242, 1.0
        %v247 = vlog2.pop %v246
        %v248 = vmul.f32 %v247, 0.6931472
        %v249 = vmul.f32 -0.5, %v242
        %v250 = vadd.f32 %v249, 1.0
        %v251 = vmul.f32 %v250, %v242
        %v252 = vand.u32 2147483647, %v242
        %vm253 = vcmp.lt.f32.partialorder %v252, 0.0004427343
        %v254 = vsel %vm253, %v251, %v248
        %v255 = vadd.f32 %v245, %v254
        %v256 = vadd.f32 %v242, 1.0
        %v257 = vrcp.pop %v256
        %vm258 = vcmp.ge.f32.partialorder %v237, 0.0
        %v259 = vmul.f32 %v242, %v257
        %v260 = vsel %vm258, %v257, %v259
        %v261 = vmul.f32 %v238, -0.5
        %v262 = vadd.f32 %v261, 0.75
        %v263 = vsub.f32 %v238, %v260
        %v264 = vand.u32 2147483647, %v263
        %v265 = vrsqrt.pop %v264
        %v266 = vmul.f32 %v264, %v265
        %vm267 = vcmp.eq.f32.partialorder %v264, inf
        %v268 = vsel %vm267, %v264, %v266
        %vm269 = vcmp.eq.f32.partialorder %v264, 0.0
        %v270 = vand.u32 %v264, 2147483648
        %v271 = vsel %vm269, %v270, %v268
        %v272 = vmul.f32 %v264, %v271
        %v273 = vmul.f32 %v255, %v262
        %v274 = vmul.f32 %v273, %v272
        %v275 = vld [vmem:[%s225] sm:$0xff]
        %v276 = vadd.f32 %v274, 0.0
        %v277 = vadd.f32 %v275, %v276
        %278 = vst [vmem:[%s225] sm:$0xff] %v277
        %s279 = sand.u32 %s106, 1
        %s280 = scalar_lea.sflag [#allocation4], %s279
        %s281 = sand.u32 %s106, 1
        %s282 = smul.addr %s281, 8
        %s283 = scalar_lea.vmem [#allocation7], %s282
        // Predicated region
        $region41: #{tpu_custom_call.1} parent=27 // pred_check
          %p284 = pneg %p116
        $region42: #{tpu_custom_call.1} parent=27 // pred_check_branch
          %286 = sbr.rel (%p284) target = $region44
        $region43: #{tpu_custom_call.1} parent=27 // pred_region
          %s288 = ssub.s32 128, 128
          %289 = vsyncadd %s280, %s288
          %s290 = smul.addr %s26, 128
          %s291 = scalar_lea.hbm %s2, %s290
          %s293 = sshll.u32 %s283, 4
          %s294 = int_to_ptr.vmem [resolvable:$true] %s293
          %296 = dma.vmem_to_hbm [thread:$0]  %s294, 128, %s291, %s280
        $region44: #{tpu_custom_call.1} parent=27 // pred_fallthru
          _
      $region28: #{tpu_custom_call.1} parent=5 // pred_fallthru
        _
      %p297 = scmp.le.s32.totalorder 2, %s17
      // Predicated region
      $region45: #{tpu_custom_call.1} parent=5 // pred_check
        %p298 = pneg %p297
      $region46: #{tpu_custom_call.1} parent=5 // pred_check_branch
        %300 = sbr.rel (%p298) target = $region48
      $region47: #{tpu_custom_call.1} parent=5 // pred_region
        %s301 = ssub.s32 %s17, 2
        // Predicated region
        $region49: #{tpu_custom_call.1} parent=47 // pred_check
          %p302 = pneg %p122
        $region50: #{tpu_custom_call.1} parent=47 // pred_check_branch
          %304 = sbr.rel (%p302) target = $region52
        $region51: #{tpu_custom_call.1} parent=47 // pred_region
          %s305 = sand.u32 %s107, 1
          %s306 = scalar_lea.sflag [#allocation4], %s305
          %s307 = sand.u32 %s107, 1
          %s308 = smul.addr %s307, 8
          %s309 = scalar_lea.vmem [#allocation7], %s308
          %310 = dma.done %s306, 128
        $region52: #{tpu_custom_call.1} parent=47 // pred_fallthru
          _
      $region48: #{tpu_custom_call.1} parent=5 // pred_fallthru
        _
    $region6: #{tpu_custom_call.1} parent=1 // loop_footer
      %s21 = sadd.s32 1, %s17
    $region7: #{tpu_custom_call.1} parent=1 // loop_footer_branch
      %16 = sbr.rel target = $region3
    $region8: #{tpu_custom_call.1} parent=1 // loop_exit
      _
    %311 = vsyncpa [#allocation3], 1
    %s312 = scalar_lea.sflag [#allocation3], 1
    %313 = vsyncpa %s312, 1
    %314 = vsyncpa [#allocation6], 1
    %s315 = scalar_lea.sflag [#allocation6], 1
    %316 = vsyncpa %s315, 1
    %317 = vsyncpa [#allocation4], 1
    %s318 = scalar_lea.sflag [#allocation4], 1
    %319 = vsyncpa %s318, 1

</llo_original>
